<compile_context>
chip_gen: v5e
topology: v5e:2x2
jax: 0.10.0
libtpu: 0.0.40
codegen_flags: <defaults>
</compile_context>

<pallas_src>
import jax
import jax.numpy as jnp
import numpy as np
from jax.experimental import pallas as pl
from jax.experimental.pallas import tpu as pltpu


def _round_up(x, m):
    return (x + m - 1) // m * m


def _kl_pointwise_sum(logits_f32, targets_f32):
    """sum over elements of xlogy(t, t) - t * log_softmax(logits) (PyTorch KLDivLoss, sum).

    Rows whose targets are all zero (padding) contribute exactly 0.
    """
    m = jnp.max(logits_f32, axis=-1, keepdims=True)
    shifted = logits_f32 - m
    lse = jnp.log(jnp.sum(jnp.exp(shifted), axis=-1, keepdims=True))
    logp = shifted - lse
    t = targets_f32
    safe_t = jnp.where(t > 0, t, 1.0)
    xlogy = jnp.where(t > 0, t * jnp.log(safe_t), 0.0)
    return jnp.sum(xlogy - t * logp)


def _cluster_ssl_kernel(logits_ref, targets_ref, pred_ref, orig_ref, mask_ref,
                        out_ref):
    # out_ref is a (1, 8, 128) lane-dense partial-sum tile owned by this grid step:
    #   row 0, lane 0: KL pointwise sum over this batch tile
    #   row 0, lane 1: sum((pred - orig)^2 * mask) over this batch tile
    #   row 0, lane 2: sum(mask) over this batch tile
    # All other elements are zero (full-tile unmasked store).

    # ---- KL partial for this batch row-tile (padded rows have targets == 0 -> 0) ----
    kl = _kl_pointwise_sum(logits_ref[...].astype(jnp.float32),
                           targets_ref[...].astype(jnp.float32))

    # ---- masked-SE partial sums (load narrow, accumulate f32) ----
    diff = pred_ref[...].astype(jnp.float32) - orig_ref[...].astype(jnp.float32)
    sq = diff * diff
    m_raw = mask_ref[...]
    if m_raw.dtype == jnp.bool_:
        # Boolean mask: select instead of convert + multiply (saves a VPU convert/mul).
        num = jnp.sum(jnp.where(m_raw, sq, 0.0))
        den = jnp.sum(jnp.where(m_raw, 1.0, 0.0))
    else:
        # General (possibly weighted) mask: keep exact (se * mask).sum() / mask.sum().
        m = m_raw.astype(jnp.float32)
        num = jnp.sum(sq * m)
        den = jnp.sum(m)

    row = jax.lax.broadcasted_iota(jnp.int32, (1, 8, 128), 1)
    lane = jax.lax.broadcasted_iota(jnp.int32, (1, 8, 128), 2)
    vals = jnp.where(lane == 0, kl,
                     jnp.where(lane == 1, num,
                               jnp.where(lane == 2, den, 0.0)))
    out_ref[...] = jnp.where(row == 0, vals, 0.0)


def _kl_only_kernel(logits_ref, targets_ref, out_ref):
    kl = _kl_pointwise_sum(logits_ref[...].astype(jnp.float32),
                           targets_ref[...].astype(jnp.float32))
    lane = jax.lax.broadcasted_iota(jnp.int32, (1, 128), 1)
    out_ref[...] = jnp.where(lane == 0, kl, 0.0)


def _choose_tile_rows(B, row_bytes, narrow):
    """Pick batch-tile rows targeting ~16 MiB of input DMA per grid step."""
    align = 32 if narrow else 8                  # sub-32-bit dtypes pack along sublanes
    target_tile_bytes = 16 * 1024 * 1024
    tb = (target_tile_bytes // max(1, row_bytes)) // align * align
    tb = max(align, tb)
    tb = min(tb, _round_up(B, align))
    # Prefer >= 2 (even) tiles so the "parallel" grid axis can shard across v7x's 2 TCs.
    if _round_up(B, tb) // tb < 2 and B > align:
        tb = _round_up((B + 1) // 2, align)
    return tb


def cluster_loss(cluster_logits, targets, predicted_genes=None,
                 original_genes=None, mask=None, *, alpha=1.0, beta=1.0):
    B, C = cluster_logits.shape
    has_ssl = (predicted_genes is not None and original_genes is not None
               and mask is not None)

    if not has_ssl:
        # KL-only variant: no dummy gene arrays are allocated / streamed / reduced.
        kl_row = pl.pallas_call(
            _kl_only_kernel,
            out_shape=jax.ShapeDtypeStruct((1, 128), jnp.float32),
            grid=(),
            in_specs=[pl.BlockSpec((B, C), lambda: (0, 0)),
                      pl.BlockSpec((B, C), lambda: (0, 0))],
            out_specs=pl.BlockSpec((1, 128), lambda: (0, 0)),
        )(cluster_logits, targets)
        cluster_loss_val = kl_row[0, 0] / B      # KLDivLoss reduction='batchmean'
        ssl_loss = jnp.float32(0.0)
        total = alpha * cluster_loss_val + beta * ssl_loss
        return total, cluster_loss_val, ssl_loss

    Bg, G = predicted_genes.shape
    assert Bg == B, "predicted_genes batch must match cluster_logits batch"
    assert original_genes.shape == (B, G) and mask.shape == (B, G)

    gene_itemsizes = [jnp.dtype(a.dtype).itemsize
                      for a in (predicted_genes, original_genes, mask)]
    logit_itemsizes = [jnp.dtype(a.dtype).itemsize for a in (cluster_logits, targets)]
    row_bytes = G * sum(gene_itemsizes) + C * sum(logit_itemsizes)
    narrow = any(s < 4 for s in gene_itemsizes)
    tb = _choose_tile_rows(B, row_bytes, narrow)

    Bp = _round_up(B, tb)
    if Bp != B:
        pad = Bp - B
        # Padded gene rows carry mask == 0 and padded targets are exactly zero, so padding
        # contributes nothing to the masked-SE sums or the per-tile KL partials.
        cluster_logits = jnp.pad(cluster_logits, ((0, pad), (0, 0)))
        targets = jnp.pad(targets, ((0, pad), (0, 0)))
        predicted_genes = jnp.pad(predicted_genes, ((0, pad), (0, 0)))
        original_genes = jnp.pad(original_genes, ((0, pad), (0, 0)))
        mask = jnp.pad(mask, ((0, pad), (0, 0)))
    nt = Bp // tb

    # VMEM budget derived from the actual double-buffered tiles (+ headroom); this is
    # ~34 MiB for the 16 MiB target tile, under v7x's 64 MiB physical VMEM and above
    # v5e's 16 MiB scoped default.
    tile_in_bytes = tb * row_bytes
    out_tile_bytes = 8 * 128 * 4
    vmem_needed = 2 * tile_in_bytes + 2 * out_tile_bytes + (2 << 20)
    vmem_limit = int(max(vmem_needed, 16 << 20))

    partials = pl.pallas_call(
        _cluster_ssl_kernel,
        out_shape=jax.ShapeDtypeStruct((nt, 8, 128), jnp.float32),
        grid=(nt,),
        in_specs=[
            pl.BlockSpec((tb, C), lambda i: (i, 0)),   # logits batch tile
            pl.BlockSpec((tb, C), lambda i: (i, 0)),   # targets batch tile
            pl.BlockSpec((tb, G), lambda i: (i, 0)),   # predicted genes batch tile
            pl.BlockSpec((tb, G), lambda i: (i, 0)),   # original genes batch tile
            pl.BlockSpec((tb, G), lambda i: (i, 0)),   # mask batch tile
        ],
        out_specs=pl.BlockSpec((1, 8, 128), lambda i: (i, 0, 0)),
        compiler_params=pltpu.CompilerParams(
            dimension_semantics=("parallel",),
            vmem_limit_bytes=vmem_limit),
    )(cluster_logits, targets, predicted_genes, original_genes, mask)

    kl_sum = jnp.sum(partials[:, 0, 0])
    mse_num = jnp.sum(partials[:, 0, 1])
    mse_den = jnp.sum(partials[:, 0, 2])

    cluster_loss_val = kl_sum / B                # KLDivLoss reduction='batchmean'
    # NOTE: matches the PyTorch reference — NaN if the mask is all zeros.
    ssl_loss = mse_num / mse_den
    total = alpha * cluster_loss_val + beta * ssl_loss
    return total, cluster_loss_val, ssl_loss


def _reference(cluster_logits, targets, predicted_genes=None, original_genes=None,
               mask=None, alpha=1.0, beta=1.0):
    logp = jax.nn.log_softmax(cluster_logits.astype(jnp.float32), axis=1)
    t = targets.astype(jnp.float32)
    xlogy = jnp.where(t > 0, t * jnp.log(jnp.where(t > 0, t, 1.0)), 0.0)
    kl = jnp.sum(xlogy - t * logp) / cluster_logits.shape[0]
    if predicted_genes is None:
        return alpha * kl, kl, jnp.float32(0.0)
    se = (predicted_genes.astype(jnp.float32) - original_genes.astype(jnp.float32)) ** 2
    m = mask.astype(jnp.float32)
    ssl = jnp.sum(se * m) / jnp.sum(m)
    return alpha * kl + beta * ssl, kl, ssl


if __name__ == "__main__":
    key = jax.random.PRNGKey(0)
    k1, k2, k3, k4, k5 = jax.random.split(key, 5)

    B, C, G = 8, 16, 128  # batch, num_clusters, num_genes
    cluster_logits = jax.random.normal(k1, (B, C), jnp.float32)
    targets = jax.nn.softmax(jax.random.normal(k2, (B, C), jnp.float32), axis=1)
    predicted_genes = jax.random.normal(k3, (B, G), jnp.float32)
    original_genes = jax.random.normal(k4, (B, G), jnp.float32)
    mask = (jax.random.uniform(k5, (B, G)) > 0.5).astype(jnp.float32)

    # 1) Full path (KL + masked MSE), f32 inputs.
    total, kl, ssl = cluster_loss(cluster_logits, targets, predicted_genes,
                                  original_genes, mask, alpha=1.0, beta=1.0)
    jax.block_until_ready(total)
    rt, rk, rs = _reference(cluster_logits, targets, predicted_genes,
                            original_genes, mask)
    np.testing.assert_allclose(np.asarray(total), np.asarray(rt), rtol=1e-5, atol=1e-5)
    np.testing.assert_allclose(np.asarray(kl), np.asarray(rk), rtol=1e-5, atol=1e-5)
    np.testing.assert_allclose(np.asarray(ssl), np.asarray(rs), rtol=1e-5, atol=1e-5)

    # 2) KL-only path (no SSL inputs) — dedicated kernel, no dummy gene traffic.
    t2, k2v, s2 = cluster_loss(cluster_logits, targets)
    jax.block_until_ready(t2)
    rt2, rk2, _ = _reference(cluster_logits, targets)
    np.testing.assert_allclose(np.asarray(t2), np.asarray(rt2), rtol=1e-5, atol=1e-5)
    np.testing.assert_allclose(np.asarray(k2v), np.asarray(rk2), rtol=1e-5, atol=1e-5)
    np.testing.assert_allclose(np.asarray(s2), 0.0, rtol=1e-7, atol=1e-7)

    # 3) Narrow-dtype path: bf16 genes + bool mask (packed sublane tiles, 32-row align,
    #    select-based masking), cast to f32 only inside the kernel.
    pred_bf = predicted_genes.astype(jnp.bfloat16)
    orig_bf = original_genes.astype(jnp.bfloat16)
    mask_b = mask > 0.5
    t3, k3v, s3 = cluster_loss(cluster_logits, targets, pred_bf, orig_bf, mask_b)
    jax.block_until_ready(t3)
    rt3, rk3, rs3 = _reference(cluster_logits, targets,
                               pred_bf.astype(jnp.float32),
                               orig_bf.astype(jnp.float32),
                               mask_b.astype(jnp.float32))
    np.testing.assert_allclose(np.asarray(t3), np.asarray(rt3), rtol=1e-5, atol=1e-5)
    np.testing.assert_allclose(np.asarray(k3v), np.asarray(rk3), rtol=1e-5, atol=1e-5)
    np.testing.assert_allclose(np.asarray(s3), np.asarray(rs3), rtol=1e-5, atol=1e-5)

    # 4) Multi-tile grid with batch padding (B not a multiple of the tile rows) to
    #    exercise per-tile KL + the nt >= 2 split and the zero-padding invariant.
    B2, G2 = 200, 512
    j1, j2, j3, j4, j5 = jax.random.split(jax.random.PRNGKey(1), 5)
    cl2 = jax.random.normal(j1, (B2, C), jnp.float32)
    tg2 = jax.nn.softmax(jax.random.normal(j2, (B2, C), jnp.float32), axis=1)
    pg2 = jax.random.normal(j3, (B2, G2), jnp.float32)
    og2 = jax.random.normal(j4, (B2, G2), jnp.float32)
    mk2 = (jax.random.uniform(j5, (B2, G2)) > 0.3).astype(jnp.float32)
    t4, k4v, s4 = cluster_loss(cl2, tg2, pg2, og2, mk2, alpha=0.7, beta=1.3)
    jax.block_until_ready(t4)
    rt4, rk4, rs4 = _reference(cl2, tg2, pg2, og2, mk2, alpha=0.7, beta=1.3)
    np.testing.assert_allclose(np.asarray(t4), np.asarray(rt4), rtol=1e-5, atol=1e-5)
    np.testing.assert_allclose(np.asarray(k4v), np.asarray(rk4), rtol=1e-5, atol=1e-5)
    np.testing.assert_allclose(np.asarray(s4), np.asarray(rs4), rtol=1e-5, atol=1e-5)

    print("KERNEL_OK")
</pallas_src>

<mosaic_0001>
module attributes {stable_mosaic.version = 11 : i64} {
  func.func @_cluster_ssl_kernel(%arg0: i32, %arg1: memref<8x16xf32, #tpu.memory_space<vmem>>, %arg2: memref<8x16xf32, #tpu.memory_space<vmem>>, %arg3: memref<8x128xf32, #tpu.memory_space<vmem>>, %arg4: memref<8x128xf32, #tpu.memory_space<vmem>>, %arg5: memref<8x128xf32, #tpu.memory_space<vmem>>, %arg6: memref<1x8x128xf32, #tpu.memory_space<vmem>>) attributes {dimension_semantics = [#tpu.dimension_semantics<parallel>], iteration_bounds = array<i64: 1>, scalar_prefetch = 0 : i64, scratch_operands = 0 : i64, tpu.core_type = #tpu.core_type<tc>, window_params = [{transform_indices = @transform_0, window_bounds = array<i64: 8, 16>}, {transform_indices = @transform_1, window_bounds = array<i64: 8, 16>}, {transform_indices = @transform_2, window_bounds = array<i64: 8, 128>}, {transform_indices = @transform_3, window_bounds = array<i64: 8, 128>}, {transform_indices = @transform_4, window_bounds = array<i64: 8, 128>}, {transform_indices = @transform_5, window_bounds = array<i64: 1, 8, 128>}]} {
    %c0 = arith.constant 0 : index
    %c0_0 = arith.constant 0 : index
    %0 = vector.load %arg1[%c0, %c0_0] : memref<8x16xf32, #tpu.memory_space<vmem>>, vector<8x16xf32>
    %c0_1 = arith.constant 0 : index
    %c0_2 = arith.constant 0 : index
    %1 = vector.load %arg2[%c0_1, %c0_2] : memref<8x16xf32, #tpu.memory_space<vmem>>, vector<8x16xf32>
    %cst = arith.constant dense<0xFF800000> : vector<8xf32>
    %2 = vector.multi_reduction <maximumf>, %0, %cst [1] : vector<8x16xf32> to vector<8xf32>
    %3 = vector.shape_cast %2 : vector<8xf32> to vector<8x1xf32>
    %4 = vector.broadcast %3 : vector<8x1xf32> to vector<8x16xf32>
    %5 = arith.subf %0, %4 : vector<8x16xf32>
    %6 = math.exp %5 : vector<8x16xf32>
    %cst_3 = arith.constant dense<0.000000e+00> : vector<8xf32>
    %7 = vector.multi_reduction <add>, %6, %cst_3 [1] : vector<8x16xf32> to vector<8xf32>
    %8 = vector.shape_cast %7 : vector<8xf32> to vector<8x1xf32>
    %9 = math.log %8 : vector<8x1xf32>
    %10 = vector.broadcast %9 : vector<8x1xf32> to vector<8x16xf32>
    %11 = arith.subf %5, %10 : vector<8x16xf32>
    %cst_4 = arith.constant 0.000000e+00 : f32
    %12 = vector.broadcast %cst_4 : f32 to vector<8x16xf32>
    %13 = arith.cmpf ogt, %1, %12 : vector<8x16xf32>
    %cst_5 = arith.constant 1.000000e+00 : f32
    %14 = vector.broadcast %cst_5 : f32 to vector<8x16xf32>
    %15 = arith.select %13, %1, %14 : vector<8x16xi1>, vector<8x16xf32>
    %cst_6 = arith.constant 0.000000e+00 : f32
    %16 = vector.broadcast %cst_6 : f32 to vector<8x16xf32>
    %17 = arith.cmpf ogt, %1, %16 : vector<8x16xf32>
    %18 = math.log %15 : vector<8x16xf32>
    %19 = arith.mulf %1, %18 : vector<8x16xf32>
    %cst_7 = arith.constant 0.000000e+00 : f32
    %20 = vector.broadcast %cst_7 : f32 to vector<8x16xf32>
    %21 = arith.select %17, %19, %20 : vector<8x16xi1>, vector<8x16xf32>
    %22 = arith.mulf %1, %11 : vector<8x16xf32>
    %23 = arith.subf %21, %22 : vector<8x16xf32>
    %24 = vector.shape_cast %23 : vector<8x16xf32> to vector<1x8x16xf32>
    %cst_8 = arith.constant dense<0.000000e+00> : vector<1xf32>
    %25 = vector.multi_reduction <add>, %24, %cst_8 [1, 2] : vector<1x8x16xf32> to vector<1xf32>
    %26 = vector.shape_cast %25 : vector<1xf32> to vector<1x1x1xf32>
    %27 = vector.extract %26[0, 0, 0] : f32 from vector<1x1x1xf32>
    %c0_9 = arith.constant 0 : index
    %c0_10 = arith.constant 0 : index
    %28 = vector.load %arg3[%c0_9, %c0_10] : memref<8x128xf32, #tpu.memory_space<vmem>>, vector<8x128xf32>
    %c0_11 = arith.constant 0 : index
    %c0_12 = arith.constant 0 : index
    %29 = vector.load %arg4[%c0_11, %c0_12] : memref<8x128xf32, #tpu.memory_space<vmem>>, vector<8x128xf32>
    %30 = arith.subf %28, %29 : vector<8x128xf32>
    %31 = arith.mulf %30, %30 : vector<8x128xf32>
    %c0_13 = arith.constant 0 : index
    %c0_14 = arith.constant 0 : index
    %32 = vector.load %arg5[%c0_13, %c0_14] : memref<8x128xf32, #tpu.memory_space<vmem>>, vector<8x128xf32>
    %33 = arith.mulf %31, %32 : vector<8x128xf32>
    %34 = vector.shape_cast %33 : vector<8x128xf32> to vector<1x8x128xf32>
    %cst_15 = arith.constant dense<0.000000e+00> : vector<1xf32>
    %35 = vector.multi_reduction <add>, %34, %cst_15 [1, 2] : vector<1x8x128xf32> to vector<1xf32>
    %36 = vector.shape_cast %35 : vector<1xf32> to vector<1x1x1xf32>
    %37 = vector.extract %36[0, 0, 0] : f32 from vector<1x1x1xf32>
    %38 = vector.shape_cast %32 : vector<8x128xf32> to vector<1x8x128xf32>
    %cst_16 = arith.constant dense<0.000000e+00> : vector<1xf32>
    %39 = vector.multi_reduction <add>, %38, %cst_16 [1, 2] : vector<1x8x128xf32> to vector<1xf32>
    %40 = vector.shape_cast %39 : vector<1xf32> to vector<1x1x1xf32>
    %41 = vector.extract %40[0, 0, 0] : f32 from vector<1x1x1xf32>
    %42 = tpu.iota {dimensions = array<i32: 1>} : vector<1x8x128xi32>
    %43 = tpu.iota {dimensions = array<i32: 2>} : vector<1x8x128xi32>
    %c0_i32 = arith.constant 0 : i32
    %44 = vector.broadcast %c0_i32 : i32 to vector<1x8x128xi32>
    %45 = arith.cmpi eq, %43, %44 : vector<1x8x128xi32>
    %c1_i32 = arith.constant 1 : i32
    %46 = vector.broadcast %c1_i32 : i32 to vector<1x8x128xi32>
    %47 = arith.cmpi eq, %43, %46 : vector<1x8x128xi32>
    %c2_i32 = arith.constant 2 : i32
    %48 = vector.broadcast %c2_i32 : i32 to vector<1x8x128xi32>
    %49 = arith.cmpi eq, %43, %48 : vector<1x8x128xi32>
    %cst_17 = arith.constant 0.000000e+00 : f32
    %50 = vector.broadcast %41 : f32 to vector<1x8x128xf32>
    %51 = vector.broadcast %cst_17 : f32 to vector<1x8x128xf32>
    %52 = arith.select %49, %50, %51 : vector<1x8x128xi1>, vector<1x8x128xf32>
    %53 = vector.broadcast %37 : f32 to vector<1x8x128xf32>
    %54 = arith.select %47, %53, %52 : vector<1x8x128xi1>, vector<1x8x128xf32>
    %55 = vector.broadcast %27 : f32 to vector<1x8x128xf32>
    %56 = arith.select %45, %55, %54 : vector<1x8x128xi1>, vector<1x8x128xf32>
    %c0_i32_18 = arith.constant 0 : i32
    %57 = vector.broadcast %c0_i32_18 : i32 to vector<1x8x128xi32>
    %58 = arith.cmpi eq, %42, %57 : vector<1x8x128xi32>
    %cst_19 = arith.constant 0.000000e+00 : f32
    %59 = vector.broadcast %cst_19 : f32 to vector<1x8x128xf32>
    %60 = arith.select %58, %56, %59 : vector<1x8x128xi1>, vector<1x8x128xf32>
    %c0_20 = arith.constant 0 : index
    %c0_21 = arith.constant 0 : index
    %c0_22 = arith.constant 0 : index
    %61 = vector.load %arg6[%c0_20, %c0_21, %c0_22] : memref<1x8x128xf32, #tpu.memory_space<vmem>>, vector<1x8x128xf32>
    tpu.vector_store %arg6[%c0_20, %c0_21, %c0_22], %60 {strides = array<i32>} : memref<1x8x128xf32, #tpu.memory_space<vmem>>, vector<1x8x128xf32>,
    return
  }
  func.func @transform_0(%arg0: i32) -> (i32, i32) {
    %c0_i32 = arith.constant 0 : i32
    %c0_i32_0 = arith.constant 0 : i32
    return %arg0, %c0_i32 : i32, i32
  }
  func.func @transform_1(%arg0: i32) -> (i32, i32) {
    %c0_i32 = arith.constant 0 : i32
    %c0_i32_0 = arith.constant 0 : i32
    return %arg0, %c0_i32 : i32, i32
  }
  func.func @transform_2(%arg0: i32) -> (i32, i32) {
    %c0_i32 = arith.constant 0 : i32
    %c0_i32_0 = arith.constant 0 : i32
    return %arg0, %c0_i32 : i32, i32
  }
  func.func @transform_3(%arg0: i32) -> (i32, i32) {
    %c0_i32 = arith.constant 0 : i32
    %c0_i32_0 = arith.constant 0 : i32
    return %arg0, %c0_i32 : i32, i32
  }
  func.func @transform_4(%arg0: i32) -> (i32, i32) {
    %c0_i32 = arith.constant 0 : i32
    %c0_i32_0 = arith.constant 0 : i32
    return %arg0, %c0_i32 : i32, i32
  }
  func.func @transform_5(%arg0: i32) -> (i32, i32, i32) {
    %c0_i32 = arith.constant 0 : i32
    %c0_i32_0 = arith.constant 0 : i32
    %c0_i32_1 = arith.constant 0 : i32
    return %arg0, %c0_i32, %c0_i32_0 : i32, i32, i32
  }
}

</mosaic_0001>

<llo_original>
// kernel: tpu_custom_call.1
$region0: #{tpu_custom_call.1}
  #allocation0 [shape = 'u32[]', space=smem, size = 0x4, offset = 0x4, fixed_abs, tag = 'smem constant byte address 0x4 - core index']
  #allocation1 [shape = 'u32[72,128]{1,0:T(1,128)}', space=vmem, size = 0x9000, scoped, tag = 'internal scratch']
  %s0 = inlined_call_operand.hbm [shape: f32[8,16], index: 0, kind: input, shape index: {}]
  %s1 = inlined_call_operand.hbm [shape: f32[8,16], index: 1, kind: input, shape index: {}]
  %s2 = inlined_call_operand.hbm [shape: f32[8,128], index: 2, kind: input, shape index: {}]
  %s3 = inlined_call_operand.hbm [shape: f32[8,128], index: 3, kind: input, shape index: {}]
  %s4 = inlined_call_operand.hbm [shape: f32[8,128], index: 4, kind: input, shape index: {}]
  %s5 = inlined_call_operand.hbm [shape: f32[1,8,128], index: 5, kind: output, shape index: {}]
  %s6 = sld [smem:[#allocation0]]
  $region50: #{tpu_custom_call.1} parent=0
    _
  %s8 = ssub.s32 1, %s6
  %s9 = scalar_select 0, %s8, %s6
  $region1: #{tpu_custom_call.1} parent=0
    #allocation2 [shape = 'u8[4096]{0}', space=vmem, size = 0x1000, scoped, tag = 'input window, operand 0, single buffered']
    #allocation3 [shape = 's32[1]{0}', space=sflag, size = 0x4, scoped, tag = 'scoped memory for tpu_custom_call.1']
    #allocation4 [shape = 's32[1]{0}', space=sflag, size = 0x4, scoped, tag = 'scoped memory for tpu_custom_call.1']
    #allocation5 [shape = 'u8[4096]{0}', space=vmem, size = 0x1000, scoped, tag = 'input window, operand 1, single buffered']
    #allocation6 [shape = 's32[1]{0}', space=sflag, size = 0x4, scoped, tag = 'scoped memory for tpu_custom_call.1']
    #allocation7 [shape = 'u8[4096]{0}', space=vmem, size = 0x1000, scoped, tag = 'input window, operand 2, single buffered']
    #allocation8 [shape = 'u8[4096]{0}', space=vmem, size = 0x1000, scoped, tag = 'input window, operand 3, single buffered']
    #allocation9 [shape = 's32[1]{0}', space=sflag, size = 0x4, scoped, tag = 'scoped memory for tpu_custom_call.1']
    #allocation10 [shape = 'u8[4096]{0}', space=vmem, size = 0x1000, scoped, tag = 'input window, operand 4, single buffered']
    #allocation11 [shape = 'u8[4096]{0}', space=vmem, size = 0x1000, scoped, tag = 'output window, operand 0, single buffered']
    %10 = vsyncpa [#allocation3], 0
    %11 = vsyncpa [#allocation6], 0
    %12 = vsyncpa [#allocation9], 0
    %13 = vsyncpa [#allocation4], 0
    // Predicated region
    $region2: #{tpu_custom_call.1} parent=1 // pred_check
      _
    $region3: #{tpu_custom_call.1} parent=1 // pred_check_branch
      %15 = sbr.rel (0) target = $region5
    $region4: #{tpu_custom_call.1} parent=1 // pred_region
      %17 = vsyncadd [#allocation3], 0
      %s19 = sshll.u32 %s0, 4
      %s20 = int_to_ptr.hbm [resolvable:$true] %s19
      %s21 = sshll.u32 [#allocation2], 4
      %s22 = int_to_ptr.vmem [resolvable:$true] %s21
      %24 = dma.hbm_to_vmem [thread:$0]  %s20, 128, %s22, [#allocation3]
    $region5: #{tpu_custom_call.1} parent=1 // pred_fallthru
      _
    // Predicated region
    $region6: #{tpu_custom_call.1} parent=1 // pred_check
      _
    $region7: #{tpu_custom_call.1} parent=1 // pred_check_branch
      %26 = sbr.rel (0) target = $region9
    $region8: #{tpu_custom_call.1} parent=1 // pred_region
      %28 = vsyncadd [#allocation6], 0
      %s30 = sshll.u32 %s1, 4
      %s31 = int_to_ptr.hbm [resolvable:$true] %s30
      %s32 = sshll.u32 [#allocation5], 4
      %s33 = int_to_ptr.vmem [resolvable:$true] %s32
      %35 = dma.hbm_to_vmem [thread:$0]  %s31, 128, %s33, [#allocation6]
    $region9: #{tpu_custom_call.1} parent=1 // pred_fallthru
      _
    // Predicated region
    $region10: #{tpu_custom_call.1} parent=1 // pred_check
      _
    $region11: #{tpu_custom_call.1} parent=1 // pred_check_branch
      %37 = sbr.rel (0) target = $region13
    $region12: #{tpu_custom_call.1} parent=1 // pred_region
      %39 = vsyncadd [#allocation6], 0
      %s41 = sshll.u32 %s2, 4
      %s42 = int_to_ptr.hbm [resolvable:$true] %s41
      %s43 = sshll.u32 [#allocation7], 4
      %s44 = int_to_ptr.vmem [resolvable:$true] %s43
      %46 = dma.hbm_to_vmem [thread:$0]  %s42, 128, %s44, [#allocation6]
    $region13: #{tpu_custom_call.1} parent=1 // pred_fallthru
      _
    // Predicated region
    $region14: #{tpu_custom_call.1} parent=1 // pred_check
      _
    $region15: #{tpu_custom_call.1} parent=1 // pred_check_branch
      %48 = sbr.rel (0) target = $region17
    $region16: #{tpu_custom_call.1} parent=1 // pred_region
      %50 = vsyncadd [#allocation9], 0
      %s52 = sshll.u32 %s3, 4
      %s53 = int_to_ptr.hbm [resolvable:$true] %s52
      %s54 = sshll.u32 [#allocation8], 4
      %s55 = int_to_ptr.vmem [resolvable:$true] %s54
      %57 = dma.hbm_to_vmem [thread:$0]  %s53, 128, %s55, [#allocation9]
    $region17: #{tpu_custom_call.1} parent=1 // pred_fallthru
      _
    // Predicated region
    $region18: #{tpu_custom_call.1} parent=1 // pred_check
      _
    $region19: #{tpu_custom_call.1} parent=1 // pred_check_branch
      %59 = sbr.rel (0) target = $region21
    $region20: #{tpu_custom_call.1} parent=1 // pred_region
      %61 = vsyncadd [#allocation9], 0
      %s63 = sshll.u32 %s4, 4
      %s64 = int_to_ptr.hbm [resolvable:$true] %s63
      %s65 = sshll.u32 [#allocation10], 4
      %s66 = int_to_ptr.vmem [resolvable:$true] %s65
      %68 = dma.hbm_to_vmem [thread:$0]  %s64, 128, %s66, [#allocation9]
    $region21: #{tpu_custom_call.1} parent=1 // pred_fallthru
      _
    // Predicated region
    $region22: #{tpu_custom_call.1} parent=1 // pred_check
      _
    $region23: #{tpu_custom_call.1} parent=1 // pred_check_branch
      %70 = sbr.rel (0) target = $region25
    $region24: #{tpu_custom_call.1} parent=1 // pred_region
      %72 = dma.done [#allocation3], 128
    $region25: #{tpu_custom_call.1} parent=1 // pred_fallthru
      _
    // Predicated region
    $region26: #{tpu_custom_call.1} parent=1 // pred_check
      _
    $region27: #{tpu_custom_call.1} parent=1 // pred_check_branch
      %74 = sbr.rel (0) target = $region29
    $region28: #{tpu_custom_call.1} parent=1 // pred_region
      %76 = dma.done [#allocation6], 128
    $region29: #{tpu_custom_call.1} parent=1 // pred_fallthru
      _
    // Predicated region
    $region30: #{tpu_custom_call.1} parent=1 // pred_check
      _
    $region31: #{tpu_custom_call.1} parent=1 // pred_check_branch
      %78 = sbr.rel (0) target = $region33
    $region32: #{tpu_custom_call.1} parent=1 // pred_region
      %80 = dma.done [#allocation6], 128
    $region33: #{tpu_custom_call.1} parent=1 // pred_fallthru
      _
    // Predicated region
    $region34: #{tpu_custom_call.1} parent=1 // pred_check
      _
    $region35: #{tpu_custom_call.1} parent=1 // pred_check_branch
      %82 = sbr.rel (0) target = $region37
    $region36: #{tpu_custom_call.1} parent=1 // pred_region
      %84 = dma.done [#allocation9], 128
    $region37: #{tpu_custom_call.1} parent=1 // pred_fallthru
      _
    // Predicated region
    $region38: #{tpu_custom_call.1} parent=1 // pred_check
      _
    $region39: #{tpu_custom_call.1} parent=1 // pred_check_branch
      %86 = sbr.rel (0) target = $region41
    $region40: #{tpu_custom_call.1} parent=1 // pred_region
      %88 = dma.done [#allocation9], 128
    $region41: #{tpu_custom_call.1} parent=1 // pred_fallthru
      _
    %v89 = vld [vmem:[#allocation2] sm:$0xff]
    %v90 = vld [vmem:[#allocation5] sm:$0xff]
    %vm91 = vcmask 130048
    %v92 = vsel %vm91, %v89, -inf
    %93 = vmax.xlane.f32.xlu0 %v92
    %v94 = vpop.xlane.xlu0 %93
    %v95 = vsub.f32 %v89, %v94
    %v96 = vmul.f32 %v95, 1.442695
    %v97 = vpow.pop %v96
    %v98 = vsel %vm91, %v97, 0.0
    %99 = vadd.xlane.f32.xlu0 %v98
    %v100 = vpop.xlane.xlu0 %99
    %v101 = vlog2.pop %v100
    %v102 = vmul.f32 %v101, 0.6931472
    %v103 = vsub.f32 %v95, %v102
    %vm104 = vcmp.gt.f32.partialorder %v90, 0.0
    %v105 = vsel %vm104, %v90, 1.0
    %v106 = vlog2.pop %v105
    %v107 = vmul.f32 %v106, 0.6931472
    %v108 = vmul.f32 %v90, %v107
    %v109 = vsel %vm104, %v108, 0.0
    %v110 = vmul.f32 %v90, %v103
    %v111 = vsub.f32 %v109, %v110
    %v112 = vsel %vm91, %v111, 0.0
    %113 = vadd.xlane.f32.xlu0 %v112
    %v114 = vpop.xlane.xlu0 %113
    %v115 = vrot.slane %v114, 4
    %v116 = vadd.f32 %v114, %v115
    %v117 = vrot.slane %v116, 2
    %v118 = vadd.f32 %v116, %v117
    %v119 = vrot.slane %v118, 1
    %v120 = vadd.f32 %v118, %v119
    %s121 = vtos %v120
    %v122 = vld [vmem:[#allocation7] sm:$0xff]
    %v123 = vld [vmem:[#allocation8] sm:$0xff]
    %v124 = vsub.f32 %v122, %v123
    %v125 = vmul.f32 %v124, %v124
    %v126 = vld [vmem:[#allocation10] sm:$0xff]
    %v127 = vmul.f32 %v125, %v126
    %128 = vadd.xlane.f32.xlu0 %v127
    %v129 = vpop.xlane.xlu0 %128
    %v130 = vrot.slane %v129, 4
    %v131 = vadd.f32 %v129, %v130
    %v132 = vrot.slane %v131, 2
    %v133 = vadd.f32 %v131, %v132
    %v134 = vrot.slane %v133, 1
    %v135 = vadd.f32 %v133, %v134
    %s136 = vtos %v135
    %137 = vadd.xlane.f32.xlu0 %v126
    %v138 = vpop.xlane.xlu0 %137
    %v139 = vrot.slane %v138, 4
    %v140 = vadd.f32 %v138, %v139
    %v141 = vrot.slane %v140, 2
    %v142 = vadd.f32 %v140, %v141
    %v143 = vrot.slane %v142, 1
    %v144 = vadd.f32 %v142, %v143
    %s145 = vtos %v144
    %v146 = vlaneseq
    %v147 = vshrl.u32 %v146, 7
    %v148 = vlaneseq
    %v149 = vand.u32 %v148, 127
    %vm150 = vcmp.eq.s32.totalorder %v149, 0
    %vm151 = vcmp.eq.s32.totalorder %v149, 1
    %vm152 = vcmp.eq.s32.totalorder %v149, 2
    %v153 = vstv %s145
    %v154 = vsel %vm152, %v153, 0.0
    %v155 = vstv %s136
    %v156 = vsel %vm151, %v155, %v154
    %v157 = vstv %s121
    %v158 = vsel %vm150, %v157, %v156
    %vm159 = vcmp.eq.s32.totalorder %v147, 0
    %v160 = vsel %vm159, %v158, 0.0
    %161 = vst [vmem:[#allocation11] sm:$0xff] %v160
    // Predicated region
    $region42: #{tpu_custom_call.1} parent=1 // pred_check
      _
    $region43: #{tpu_custom_call.1} parent=1 // pred_check_branch
      %163 = sbr.rel (0) target = $region45
    $region44: #{tpu_custom_call.1} parent=1 // pred_region
      %165 = vsyncadd [#allocation4], 0
      %s167 = sshll.u32 [#allocation11], 4
      %s168 = int_to_ptr.vmem [resolvable:$true] %s167
      %s169 = sshll.u32 %s5, 4
      %s170 = int_to_ptr.hbm [resolvable:$true] %s169
      %172 = dma.vmem_to_hbm [thread:$0]  %s168, 128, %s170, [#allocation4]
    $region45: #{tpu_custom_call.1} parent=1 // pred_fallthru
      _
    // Predicated region
    $region46: #{tpu_custom_call.1} parent=1 // pred_check
      _
    $region47: #{tpu_custom_call.1} parent=1 // pred_check_branch
      %174 = sbr.rel (0) target = $region49
    $region48: #{tpu_custom_call.1} parent=1 // pred_region
      %176 = dma.done [#allocation4], 128
    $region49: #{tpu_custom_call.1} parent=1 // pred_fallthru
      _
    %177 = vsyncpa [#allocation3], 1
    %178 = vsyncpa [#allocation6], 1
    %179 = vsyncpa [#allocation9], 1
    %180 = vsyncpa [#allocation4], 1

</llo_original>
